<compile_context>
chip_gen: v5e
topology: v5e:2x2
jax: 0.10.0
libtpu: 0.0.40
codegen_flags: <defaults>
</compile_context>

<pallas_src>
import functools

import jax
import jax.numpy as jnp
from jax.experimental import pallas as pl
from jax.experimental.pallas import tpu as pltpu


def _round_up(v, m):
    return (v + m - 1) // m * m


# ---------------------------------------------------------------------------
# Primary path: n_features == 1, n_output == 1  ->  batch-in-lanes VPU kernel.
# ---------------------------------------------------------------------------
def _lanes_kernel(w1_ref, b1_ref, w2_ref, b2_ref, x_ref, o_ref, *, n_hidden):
    # w*_ref / b*_ref: small f32 vectors in SMEM (scalar table).
    # x_ref / o_ref:   [TR, 128] f32 tiles, every lane is a real sample.
    x = x_ref[...]
    acc = jnp.zeros_like(x)
    for j in range(n_hidden):            # static unroll: VPU mul/add/max/mul/add chain
        acc = acc + w2_ref[j] * jnp.maximum(w1_ref[j] * x + b1_ref[j], 0.0)
    o_ref[...] = acc + b2_ref[0]


def _forward_batch_in_lanes(x, w1, b1, w2, b2, *, block_rows=512):
    n = x.shape[0]
    h = w1.shape[1]
    lanes = 128

    # Rows of 128 lanes, sublane-aligned (multiple of 8 for f32).
    rows0 = _round_up(max(1, -(-n // lanes)), 8)
    # Row tile: multiple of 8, capped at block_rows; aim for >= 2 grid steps so the
    # "parallel" batch axis can shard across both TensorCores on v7x.
    tr = min(_round_up(block_rows, 8), rows0)
    if rows0 >= 16:
        tr = min(tr, _round_up(-(-rows0 // 2), 8))
    rows = _round_up(rows0, tr)
    n_pad = rows * lanes

    xf = jnp.zeros((n_pad,), jnp.float32).at[:n].set(x[:, 0].astype(jnp.float32))
    x2 = xf.reshape(rows, lanes)

    # Weights as flat f32 vectors -> SMEM scalar tables (no padding, no per-call
    # pad/scatter HLOs).
    w1v = w1.reshape(h).astype(jnp.float32)
    b1v = b1.reshape(h).astype(jnp.float32)
    w2v = w2.reshape(h).astype(jnp.float32)
    b2v = b2.reshape(1).astype(jnp.float32)

    # Real work / actual DMA traffic (f = o = 1).
    flops = 2 * n * (h + h)
    bytes_accessed = 4 * (2 * n_pad + 3 * h + 1)

    out = pl.pallas_call(
        functools.partial(_lanes_kernel, n_hidden=h),
        out_shape=jax.ShapeDtypeStruct((rows, lanes), jnp.float32),
        grid=(rows // tr,),
        in_specs=[
            pl.BlockSpec(memory_space=pltpu.MemorySpace.SMEM),   # w1 (H,)
            pl.BlockSpec(memory_space=pltpu.MemorySpace.SMEM),   # b1 (H,)
            pl.BlockSpec(memory_space=pltpu.MemorySpace.SMEM),   # w2 (H,)
            pl.BlockSpec(memory_space=pltpu.MemorySpace.SMEM),   # b2 (1,)
            pl.BlockSpec((tr, lanes), lambda i: (i, 0)),         # x: batch-in-lanes tile
        ],
        out_specs=pl.BlockSpec((tr, lanes), lambda i: (i, 0)),
        compiler_params=pltpu.CompilerParams(
            dimension_semantics=("parallel",),
        ),
        cost_estimate=pl.CostEstimate(
            flops=flops, transcendentals=0, bytes_accessed=bytes_accessed),
    )(w1v, b1v, w2v, b2v, x2)

    return out.reshape(-1)[:n].reshape(n, 1)


# ---------------------------------------------------------------------------
# General fallback: arbitrary n_features / n_output (narrow, unpadded output).
# ---------------------------------------------------------------------------
def _mlp_tiled_kernel(x_ref, w1_ref, b1_ref, w2_ref, b2_ref, o_ref):
    x = x_ref[...]                       # [TM, F]
    w1 = w1_ref[...]                     # [F, Hp]   (hidden lane-padded to 128)
    b1 = b1_ref[...]                     # [1, Hp]
    tm, f = x.shape
    hp = w1.shape[1]

    if f < 16:
        # Tiny contraction depth: VPU broadcast multiply-accumulate instead of an
        # MXU push that would be mostly zero padding.
        hid = jnp.broadcast_to(b1, (tm, hp))
        for k in range(f):
            hid = hid + x[:, k:k + 1] * w1[k:k + 1, :]
    else:
        hid = jnp.dot(x, w1, preferred_element_type=jnp.float32) + b1
    hid = jnp.maximum(hid, 0.0)

    # Second layer writes only the real output columns (no 128-wide padding).
    y = jnp.dot(hid, w2_ref[...], preferred_element_type=jnp.float32) + b2_ref[...]
    o_ref[...] = y.astype(o_ref.dtype)


def _forward_tiled(x, w1, b1, w2, b2, *, block_rows=1024):
    n, f = x.shape
    h = w1.shape[1]
    o = w2.shape[1]

    hp = _round_up(h, 128)
    # TODO(synk): pre-pad / cache these weights at parameter-creation time to avoid
    # per-call padding HLOs on this (rarely used) general path.
    w1p = jnp.zeros((f, hp), jnp.float32).at[:, :h].set(w1)
    b1p = jnp.zeros((1, hp), jnp.float32).at[:, :h].set(b1)
    w2p = jnp.zeros((hp, o), jnp.float32).at[:h, :].set(w2)
    b2p = b2.reshape(1, o).astype(jnp.float32)

    tm = min(_round_up(block_rows, 8), _round_up(n, 8))
    if n > 8:
        tm = min(tm, _round_up(-(-_round_up(n, 8) // 2), 8))   # grid >= 2 for v7x
    n_pad = _round_up(n, tm)
    xp = x if n_pad == n else jnp.zeros((n_pad, f), x.dtype).at[:n].set(x)

    flops = 2 * n * (f * h + h * o)
    bytes_accessed = 4 * (n * f + f * h + h + h * o + o + n * o)

    out = pl.pallas_call(
        _mlp_tiled_kernel,
        out_shape=jax.ShapeDtypeStruct((n_pad, o), jnp.float32),
        grid=(n_pad // tm,),
        in_specs=[
            pl.BlockSpec((tm, f), lambda i: (i, 0)),    # x: batch-tiled
            pl.BlockSpec((f, hp), lambda i: (0, 0)),    # w1: resident
            pl.BlockSpec((1, hp), lambda i: (0, 0)),    # b1: resident
            pl.BlockSpec((hp, o), lambda i: (0, 0)),    # w2: resident
            pl.BlockSpec((1, o), lambda i: (0, 0)),     # b2: resident
        ],
        out_specs=pl.BlockSpec((tm, o), lambda i: (i, 0)),
        compiler_params=pltpu.CompilerParams(
            dimension_semantics=("parallel",),
        ),
        cost_estimate=pl.CostEstimate(
            flops=flops, transcendentals=0, bytes_accessed=bytes_accessed),
    )(xp, w1p, b1p, w2p, b2p)

    return out[:n, :]


def net_forward(x, w1, b1, w2, b2, *, block_rows=512):
    """x: [N, n_features] f32; w1: [n_features, n_hidden]; b1: [1, n_hidden];
    w2: [n_hidden, n_output]; b2: [1, n_output].  Returns [N, n_output] f32."""
    n_features = w1.shape[0]
    n_output = w2.shape[1]
    if n_features == 1 and n_output == 1:
        return _forward_batch_in_lanes(x, w1, b1, w2, b2, block_rows=block_rows)
    return _forward_tiled(x, w1, b1, w2, b2, block_rows=max(block_rows, 1024))


def init_params(key, n_features, n_hidden, n_output):
    # Deterministic init mirroring torch.nn.Linear's U(-1/sqrt(fan_in), 1/sqrt(fan_in)).
    k1, k2, k3, k4 = jax.random.split(key, 4)
    s1 = 1.0 / jnp.sqrt(n_features)
    s2 = 1.0 / jnp.sqrt(n_hidden)
    w1 = jax.random.uniform(k1, (n_features, n_hidden), jnp.float32, -s1, s1)
    b1 = jax.random.uniform(k2, (1, n_hidden), jnp.float32, -s1, s1)
    w2 = jax.random.uniform(k3, (n_hidden, n_output), jnp.float32, -s2, s2)
    b2 = jax.random.uniform(k4, (1, n_output), jnp.float32, -s2, s2)
    return w1, b1, w2, b2


if __name__ == "__main__":
    # Matches the reference script: x = unsqueeze(linspace(-1, 1, 100), dim=1) -> [100, 1]
    n_features, n_hidden, n_output = 1, 32, 1
    x = jnp.expand_dims(jnp.linspace(-1.0, 1.0, 100, dtype=jnp.float32), axis=1)

    key = jax.random.PRNGKey(0)
    w1, b1, w2, b2 = init_params(key, n_features, n_hidden, n_output)

    out = net_forward(x, w1, b1, w2, b2)
    out = jax.block_until_ready(out)

    # Cross-check against plain-JAX reference of the same forward pass.
    ref = jnp.maximum(x @ w1 + b1, 0.0) @ w2 + b2
    assert out.shape == (100, n_output)
    assert jnp.allclose(out, ref, atol=1e-5, rtol=1e-5)

    print("KERNEL_OK")
</pallas_src>

<mosaic_0001>
module attributes {stable_mosaic.version = 11 : i64} {
  func.func @_lanes_kernel(%arg0: i32, %arg1: memref<32xf32, #tpu.memory_space<smem>>, %arg2: memref<32xf32, #tpu.memory_space<smem>>, %arg3: memref<32xf32, #tpu.memory_space<smem>>, %arg4: memref<1xf32, #tpu.memory_space<smem>>, %arg5: memref<8x128xf32, #tpu.memory_space<vmem>>, %arg6: memref<8x128xf32, #tpu.memory_space<vmem>>) attributes {dimension_semantics = [#tpu.dimension_semantics<parallel>], iteration_bounds = array<i64: 1>, scalar_prefetch = 0 : i64, scratch_operands = 0 : i64, tpu.core_type = #tpu.core_type<tc>, window_params = [{transform_indices = @transform_0, window_bounds = array<i64: 32>}, {transform_indices = @transform_1, window_bounds = array<i64: 32>}, {transform_indices = @transform_2, window_bounds = array<i64: 32>}, {transform_indices = @transform_3, window_bounds = array<i64: 1>}, {transform_indices = @transform_4, window_bounds = array<i64: 8, 128>}, {transform_indices = @transform_5, window_bounds = array<i64: 8, 128>}]} {
    %c0 = arith.constant 0 : index
    %c0_0 = arith.constant 0 : index
    %0 = vector.load %arg5[%c0, %c0_0] : memref<8x128xf32, #tpu.memory_space<vmem>>, vector<8x128xf32>
    %cst = arith.constant 0.000000e+00 : f32
    %1 = vector.broadcast %cst : f32 to vector<8x128xf32>
    %c0_1 = arith.constant 0 : index
    %2 = memref.load %arg3[%c0_1] : memref<32xf32, #tpu.memory_space<smem>>
    %c0_2 = arith.constant 0 : index
    %3 = memref.load %arg1[%c0_2] : memref<32xf32, #tpu.memory_space<smem>>
    %4 = vector.broadcast %3 : f32 to vector<8x128xf32>
    %5 = arith.mulf %4, %0 : vector<8x128xf32>
    %c0_3 = arith.constant 0 : index
    %6 = memref.load %arg2[%c0_3] : memref<32xf32, #tpu.memory_space<smem>>
    %7 = vector.broadcast %6 : f32 to vector<8x128xf32>
    %8 = arith.addf %5, %7 : vector<8x128xf32>
    %cst_4 = arith.constant 0.000000e+00 : f32
    %9 = vector.broadcast %cst_4 : f32 to vector<8x128xf32>
    %10 = arith.maximumf %8, %9 : vector<8x128xf32>
    %11 = vector.broadcast %2 : f32 to vector<8x128xf32>
    %12 = arith.mulf %11, %10 : vector<8x128xf32>
    %13 = arith.addf %1, %12 : vector<8x128xf32>
    %c1 = arith.constant 1 : index
    %14 = memref.load %arg3[%c1] : memref<32xf32, #tpu.memory_space<smem>>
    %c1_5 = arith.constant 1 : index
    %15 = memref.load %arg1[%c1_5] : memref<32xf32, #tpu.memory_space<smem>>
    %16 = vector.broadcast %15 : f32 to vector<8x128xf32>
    %17 = arith.mulf %16, %0 : vector<8x128xf32>
    %c1_6 = arith.constant 1 : index
    %18 = memref.load %arg2[%c1_6] : memref<32xf32, #tpu.memory_space<smem>>
    %19 = vector.broadcast %18 : f32 to vector<8x128xf32>
    %20 = arith.addf %17, %19 : vector<8x128xf32>
    %cst_7 = arith.constant 0.000000e+00 : f32
    %21 = vector.broadcast %cst_7 : f32 to vector<8x128xf32>
    %22 = arith.maximumf %20, %21 : vector<8x128xf32>
    %23 = vector.broadcast %14 : f32 to vector<8x128xf32>
    %24 = arith.mulf %23, %22 : vector<8x128xf32>
    %25 = arith.addf %13, %24 : vector<8x128xf32>
    %c2 = arith.constant 2 : index
    %26 = memref.load %arg3[%c2] : memref<32xf32, #tpu.memory_space<smem>>
    %c2_8 = arith.constant 2 : index
    %27 = memref.load %arg1[%c2_8] : memref<32xf32, #tpu.memory_space<smem>>
    %28 = vector.broadcast %27 : f32 to vector<8x128xf32>
    %29 = arith.mulf %28, %0 : vector<8x128xf32>
    %c2_9 = arith.constant 2 : index
    %30 = memref.load %arg2[%c2_9] : memref<32xf32, #tpu.memory_space<smem>>
    %31 = vector.broadcast %30 : f32 to vector<8x128xf32>
    %32 = arith.addf %29, %31 : vector<8x128xf32>
    %cst_10 = arith.constant 0.000000e+00 : f32
    %33 = vector.broadcast %cst_10 : f32 to vector<8x128xf32>
    %34 = arith.maximumf %32, %33 : vector<8x128xf32>
    %35 = vector.broadcast %26 : f32 to vector<8x128xf32>
    %36 = arith.mulf %35, %34 : vector<8x128xf32>
    %37 = arith.addf %25, %36 : vector<8x128xf32>
    %c3 = arith.constant 3 : index
    %38 = memref.load %arg3[%c3] : memref<32xf32, #tpu.memory_space<smem>>
    %c3_11 = arith.constant 3 : index
    %39 = memref.load %arg1[%c3_11] : memref<32xf32, #tpu.memory_space<smem>>
    %40 = vector.broadcast %39 : f32 to vector<8x128xf32>
    %41 = arith.mulf %40, %0 : vector<8x128xf32>
    %c3_12 = arith.constant 3 : index
    %42 = memref.load %arg2[%c3_12] : memref<32xf32, #tpu.memory_space<smem>>
    %43 = vector.broadcast %42 : f32 to vector<8x128xf32>
    %44 = arith.addf %41, %43 : vector<8x128xf32>
    %cst_13 = arith.constant 0.000000e+00 : f32
    %45 = vector.broadcast %cst_13 : f32 to vector<8x128xf32>
    %46 = arith.maximumf %44, %45 : vector<8x128xf32>
    %47 = vector.broadcast %38 : f32 to vector<8x128xf32>
    %48 = arith.mulf %47, %46 : vector<8x128xf32>
    %49 = arith.addf %37, %48 : vector<8x128xf32>
    %c4 = arith.constant 4 : index
    %50 = memref.load %arg3[%c4] : memref<32xf32, #tpu.memory_space<smem>>
    %c4_14 = arith.constant 4 : index
    %51 = memref.load %arg1[%c4_14] : memref<32xf32, #tpu.memory_space<smem>>
    %52 = vector.broadcast %51 : f32 to vector<8x128xf32>
    %53 = arith.mulf %52, %0 : vector<8x128xf32>
    %c4_15 = arith.constant 4 : index
    %54 = memref.load %arg2[%c4_15] : memref<32xf32, #tpu.memory_space<smem>>
    %55 = vector.broadcast %54 : f32 to vector<8x128xf32>
    %56 = arith.addf %53, %55 : vector<8x128xf32>
    %cst_16 = arith.constant 0.000000e+00 : f32
    %57 = vector.broadcast %cst_16 : f32 to vector<8x128xf32>
    %58 = arith.maximumf %56, %57 : vector<8x128xf32>
    %59 = vector.broadcast %50 : f32 to vector<8x128xf32>
    %60 = arith.mulf %59, %58 : vector<8x128xf32>
    %61 = arith.addf %49, %60 : vector<8x128xf32>
    %c5 = arith.constant 5 : index
    %62 = memref.load %arg3[%c5] : memref<32xf32, #tpu.memory_space<smem>>
    %c5_17 = arith.constant 5 : index
    %63 = memref.load %arg1[%c5_17] : memref<32xf32, #tpu.memory_space<smem>>
    %64 = vector.broadcast %63 : f32 to vector<8x128xf32>
    %65 = arith.mulf %64, %0 : vector<8x128xf32>
    %c5_18 = arith.constant 5 : index
    %66 = memref.load %arg2[%c5_18] : memref<32xf32, #tpu.memory_space<smem>>
    %67 = vector.broadcast %66 : f32 to vector<8x128xf32>
    %68 = arith.addf %65, %67 : vector<8x128xf32>
    %cst_19 = arith.constant 0.000000e+00 : f32
    %69 = vector.broadcast %cst_19 : f32 to vector<8x128xf32>
    %70 = arith.maximumf %68, %69 : vector<8x128xf32>
    %71 = vector.broadcast %62 : f32 to vector<8x128xf32>
    %72 = arith.mulf %71, %70 : vector<8x128xf32>
    %73 = arith.addf %61, %72 : vector<8x128xf32>
    %c6 = arith.constant 6 : index
    %74 = memref.load %arg3[%c6] : memref<32xf32, #tpu.memory_space<smem>>
    %c6_20 = arith.constant 6 : index
    %75 = memref.load %arg1[%c6_20] : memref<32xf32, #tpu.memory_space<smem>>
    %76 = vector.broadcast %75 : f32 to vector<8x128xf32>
    %77 = arith.mulf %76, %0 : vector<8x128xf32>
    %c6_21 = arith.constant 6 : index
    %78 = memref.load %arg2[%c6_21] : memref<32xf32, #tpu.memory_space<smem>>
    %79 = vector.broadcast %78 : f32 to vector<8x128xf32>
    %80 = arith.addf %77, %79 : vector<8x128xf32>
    %cst_22 = arith.constant 0.000000e+00 : f32
    %81 = vector.broadcast %cst_22 : f32 to vector<8x128xf32>
    %82 = arith.maximumf %80, %81 : vector<8x128xf32>
    %83 = vector.broadcast %74 : f32 to vector<8x128xf32>
    %84 = arith.mulf %83, %82 : vector<8x128xf32>
    %85 = arith.addf %73, %84 : vector<8x128xf32>
    %c7 = arith.constant 7 : index
    %86 = memref.load %arg3[%c7] : memref<32xf32, #tpu.memory_space<smem>>
    %c7_23 = arith.constant 7 : index
    %87 = memref.load %arg1[%c7_23] : memref<32xf32, #tpu.memory_space<smem>>
    %88 = vector.broadcast %87 : f32 to vector<8x128xf32>
    %89 = arith.mulf %88, %0 : vector<8x128xf32>
    %c7_24 = arith.constant 7 : index
    %90 = memref.load %arg2[%c7_24] : memref<32xf32, #tpu.memory_space<smem>>
    %91 = vector.broadcast %90 : f32 to vector<8x128xf32>
    %92 = arith.addf %89, %91 : vector<8x128xf32>
    %cst_25 = arith.constant 0.000000e+00 : f32
    %93 = vector.broadcast %cst_25 : f32 to vector<8x128xf32>
    %94 = arith.maximumf %92, %93 : vector<8x128xf32>
    %95 = vector.broadcast %86 : f32 to vector<8x128xf32>
    %96 = arith.mulf %95, %94 : vector<8x128xf32>
    %97 = arith.addf %85, %96 : vector<8x128xf32>
    %c8 = arith.constant 8 : index
    %98 = memref.load %arg3[%c8] : memref<32xf32, #tpu.memory_space<smem>>
    %c8_26 = arith.constant 8 : index
    %99 = memref.load %arg1[%c8_26] : memref<32xf32, #tpu.memory_space<smem>>
    %100 = vector.broadcast %99 : f32 to vector<8x128xf32>
    %101 = arith.mulf %100, %0 : vector<8x128xf32>
    %c8_27 = arith.constant 8 : index
    %102 = memref.load %arg2[%c8_27] : memref<32xf32, #tpu.memory_space<smem>>
    %103 = vector.broadcast %102 : f32 to vector<8x128xf32>
    %104 = arith.addf %101, %103 : vector<8x128xf32>
    %cst_28 = arith.constant 0.000000e+00 : f32
    %105 = vector.broadcast %cst_28 : f32 to vector<8x128xf32>
    %106 = arith.maximumf %104, %105 : vector<8x128xf32>
    %107 = vector.broadcast %98 : f32 to vector<8x128xf32>
    %108 = arith.mulf %107, %106 : vector<8x128xf32>
    %109 = arith.addf %97, %108 : vector<8x128xf32>
    %c9 = arith.constant 9 : index
    %110 = memref.load %arg3[%c9] : memref<32xf32, #tpu.memory_space<smem>>
    %c9_29 = arith.constant 9 : index
    %111 = memref.load %arg1[%c9_29] : memref<32xf32, #tpu.memory_space<smem>>
    %112 = vector.broadcast %111 : f32 to vector<8x128xf32>
    %113 = arith.mulf %112, %0 : vector<8x128xf32>
    %c9_30 = arith.constant 9 : index
    %114 = memref.load %arg2[%c9_30] : memref<32xf32, #tpu.memory_space<smem>>
    %115 = vector.broadcast %114 : f32 to vector<8x128xf32>
    %116 = arith.addf %113, %115 : vector<8x128xf32>
    %cst_31 = arith.constant 0.000000e+00 : f32
    %117 = vector.broadcast %cst_31 : f32 to vector<8x128xf32>
    %118 = arith.maximumf %116, %117 : vector<8x128xf32>
    %119 = vector.broadcast %110 : f32 to vector<8x128xf32>
    %120 = arith.mulf %119, %118 : vector<8x128xf32>
    %121 = arith.addf %109, %120 : vector<8x128xf32>
    %c10 = arith.constant 10 : index
    %122 = memref.load %arg3[%c10] : memref<32xf32, #tpu.memory_space<smem>>
    %c10_32 = arith.constant 10 : index
    %123 = memref.load %arg1[%c10_32] : memref<32xf32, #tpu.memory_space<smem>>
    %124 = vector.broadcast %123 : f32 to vector<8x128xf32>
    %125 = arith.mulf %124, %0 : vector<8x128xf32>
    %c10_33 = arith.constant 10 : index
    %126 = memref.load %arg2[%c10_33] : memref<32xf32, #tpu.memory_space<smem>>
    %127 = vector.broadcast %126 : f32 to vector<8x128xf32>
    %128 = arith.addf %125, %127 : vector<8x128xf32>
    %cst_34 = arith.constant 0.000000e+00 : f32
    %129 = vector.broadcast %cst_34 : f32 to vector<8x128xf32>
    %130 = arith.maximumf %128, %129 : vector<8x128xf32>
    %131 = vector.broadcast %122 : f32 to vector<8x128xf32>
    %132 = arith.mulf %131, %130 : vector<8x128xf32>
    %133 = arith.addf %121, %132 : vector<8x128xf32>
    %c11 = arith.constant 11 : index
    %134 = memref.load %arg3[%c11] : memref<32xf32, #tpu.memory_space<smem>>
    %c11_35 = arith.constant 11 : index
    %135 = memref.load %arg1[%c11_35] : memref<32xf32, #tpu.memory_space<smem>>
    %136 = vector.broadcast %135 : f32 to vector<8x128xf32>
    %137 = arith.mulf %136, %0 : vector<8x128xf32>
    %c11_36 = arith.constant 11 : index
    %138 = memref.load %arg2[%c11_36] : memref<32xf32, #tpu.memory_space<smem>>
    %139 = vector.broadcast %138 : f32 to vector<8x128xf32>
    %140 = arith.addf %137, %139 : vector<8x128xf32>
    %cst_37 = arith.constant 0.000000e+00 : f32
    %141 = vector.broadcast %cst_37 : f32 to vector<8x128xf32>
    %142 = arith.maximumf %140, %141 : vector<8x128xf32>
    %143 = vector.broadcast %134 : f32 to vector<8x128xf32>
    %144 = arith.mulf %143, %142 : vector<8x128xf32>
    %145 = arith.addf %133, %144 : vector<8x128xf32>
    %c12 = arith.constant 12 : index
    %146 = memref.load %arg3[%c12] : memref<32xf32, #tpu.memory_space<smem>>
    %c12_38 = arith.constant 12 : index
    %147 = memref.load %arg1[%c12_38] : memref<32xf32, #tpu.memory_space<smem>>
    %148 = vector.broadcast %147 : f32 to vector<8x128xf32>
    %149 = arith.mulf %148, %0 : vector<8x128xf32>
    %c12_39 = arith.constant 12 : index
    %150 = memref.load %arg2[%c12_39] : memref<32xf32, #tpu.memory_space<smem>>
    %151 = vector.broadcast %150 : f32 to vector<8x128xf32>
    %152 = arith.addf %149, %151 : vector<8x128xf32>
    %cst_40 = arith.constant 0.000000e+00 : f32
    %153 = vector.broadcast %cst_40 : f32 to vector<8x128xf32>
    %154 = arith.maximumf %152, %153 : vector<8x128xf32>
    %155 = vector.broadcast %146 : f32 to vector<8x128xf32>
    %156 = arith.mulf %155, %154 : vector<8x128xf32>
    %157 = arith.addf %145, %156 : vector<8x128xf32>
    %c13 = arith.constant 13 : index
    %158 = memref.load %arg3[%c13] : memref<32xf32, #tpu.memory_space<smem>>
    %c13_41 = arith.constant 13 : index
    %159 = memref.load %arg1[%c13_41] : memref<32xf32, #tpu.memory_space<smem>>
    %160 = vector.broadcast %159 : f32 to vector<8x128xf32>
    %161 = arith.mulf %160, %0 : vector<8x128xf32>
    %c13_42 = arith.constant 13 : index
    %162 = memref.load %arg2[%c13_42] : memref<32xf32, #tpu.memory_space<smem>>
    %163 = vector.broadcast %162 : f32 to vector<8x128xf32>
    %164 = arith.addf %161, %163 : vector<8x128xf32>
    %cst_43 = arith.constant 0.000000e+00 : f32
    %165 = vector.broadcast %cst_43 : f32 to vector<8x128xf32>
    %166 = arith.maximumf %164, %165 : vector<8x128xf32>
    %167 = vector.broadcast %158 : f32 to vector<8x128xf32>
    %168 = arith.mulf %167, %166 : vector<8x128xf32>
    %169 = arith.addf %157, %168 : vector<8x128xf32>
    %c14 = arith.constant 14 : index
    %170 = memref.load %arg3[%c14] : memref<32xf32, #tpu.memory_space<smem>>
    %c14_44 = arith.constant 14 : index
    %171 = memref.load %arg1[%c14_44] : memref<32xf32, #tpu.memory_space<smem>>
    %172 = vector.broadcast %171 : f32 to vector<8x128xf32>
    %173 = arith.mulf %172, %0 : vector<8x128xf32>
    %c14_45 = arith.constant 14 : index
    %174 = memref.load %arg2[%c14_45] : memref<32xf32, #tpu.memory_space<smem>>
    %175 = vector.broadcast %174 : f32 to vector<8x128xf32>
    %176 = arith.addf %173, %175 : vector<8x128xf32>
    %cst_46 = arith.constant 0.000000e+00 : f32
    %177 = vector.broadcast %cst_46 : f32 to vector<8x128xf32>
    %178 = arith.maximumf %176, %177 : vector<8x128xf32>
    %179 = vector.broadcast %170 : f32 to vector<8x128xf32>
    %180 = arith.mulf %179, %178 : vector<8x128xf32>
    %181 = arith.addf %169, %180 : vector<8x128xf32>
    %c15 = arith.constant 15 : index
    %182 = memref.load %arg3[%c15] : memref<32xf32, #tpu.memory_space<smem>>
    %c15_47 = arith.constant 15 : index
    %183 = memref.load %arg1[%c15_47] : memref<32xf32, #tpu.memory_space<smem>>
    %184 = vector.broadcast %183 : f32 to vector<8x128xf32>
    %185 = arith.mulf %184, %0 : vector<8x128xf32>
    %c15_48 = arith.constant 15 : index
    %186 = memref.load %arg2[%c15_48] : memref<32xf32, #tpu.memory_space<smem>>
    %187 = vector.broadcast %186 : f32 to vector<8x128xf32>
    %188 = arith.addf %185, %187 : vector<8x128xf32>
    %cst_49 = arith.constant 0.000000e+00 : f32
    %189 = vector.broadcast %cst_49 : f32 to vector<8x128xf32>
    %190 = arith.maximumf %188, %189 : vector<8x128xf32>
    %191 = vector.broadcast %182 : f32 to vector<8x128xf32>
    %192 = arith.mulf %191, %190 : vector<8x128xf32>
    %193 = arith.addf %181, %192 : vector<8x128xf32>
    %c16 = arith.constant 16 : index
    %194 = memref.load %arg3[%c16] : memref<32xf32, #tpu.memory_space<smem>>
    %c16_50 = arith.constant 16 : index
    %195 = memref.load %arg1[%c16_50] : memref<32xf32, #tpu.memory_space<smem>>
    %196 = vector.broadcast %195 : f32 to vector<8x128xf32>
    %197 = arith.mulf %196, %0 : vector<8x128xf32>
    %c16_51 = arith.constant 16 : index
    %198 = memref.load %arg2[%c16_51] : memref<32xf32, #tpu.memory_space<smem>>
    %199 = vector.broadcast %198 : f32 to vector<8x128xf32>
    %200 = arith.addf %197, %199 : vector<8x128xf32>
    %cst_52 = arith.constant 0.000000e+00 : f32
    %201 = vector.broadcast %cst_52 : f32 to vector<8x128xf32>
    %202 = arith.maximumf %200, %201 : vector<8x128xf32>
    %203 = vector.broadcast %194 : f32 to vector<8x128xf32>
    %204 = arith.mulf %203, %202 : vector<8x128xf32>
    %205 = arith.addf %193, %204 : vector<8x128xf32>
    %c17 = arith.constant 17 : index
    %206 = memref.load %arg3[%c17] : memref<32xf32, #tpu.memory_space<smem>>
    %c17_53 = arith.constant 17 : index
    %207 = memref.load %arg1[%c17_53] : memref<32xf32, #tpu.memory_space<smem>>
    %208 = vector.broadcast %207 : f32 to vector<8x128xf32>
    %209 = arith.mulf %208, %0 : vector<8x128xf32>
    %c17_54 = arith.constant 17 : index
    %210 = memref.load %arg2[%c17_54] : memref<32xf32, #tpu.memory_space<smem>>
    %211 = vector.broadcast %210 : f32 to vector<8x128xf32>
    %212 = arith.addf %209, %211 : vector<8x128xf32>
    %cst_55 = arith.constant 0.000000e+00 : f32
    %213 = vector.broadcast %cst_55 : f32 to vector<8x128xf32>
    %214 = arith.maximumf %212, %213 : vector<8x128xf32>
    %215 = vector.broadcast %206 : f32 to vector<8x128xf32>
    %216 = arith.mulf %215, %214 : vector<8x128xf32>
    %217 = arith.addf %205, %216 : vector<8x128xf32>
    %c18 = arith.constant 18 : index
    %218 = memref.load %arg3[%c18] : memref<32xf32, #tpu.memory_space<smem>>
    %c18_56 = arith.constant 18 : index
    %219 = memref.load %arg1[%c18_56] : memref<32xf32, #tpu.memory_space<smem>>
    %220 = vector.broadcast %219 : f32 to vector<8x128xf32>
    %221 = arith.mulf %220, %0 : vector<8x128xf32>
    %c18_57 = arith.constant 18 : index
    %222 = memref.load %arg2[%c18_57] : memref<32xf32, #tpu.memory_space<smem>>
    %223 = vector.broadcast %222 : f32 to vector<8x128xf32>
    %224 = arith.addf %221, %223 : vector<8x128xf32>
    %cst_58 = arith.constant 0.000000e+00 : f32
    %225 = vector.broadcast %cst_58 : f32 to vector<8x128xf32>
    %226 = arith.maximumf %224, %225 : vector<8x128xf32>
    %227 = vector.broadcast %218 : f32 to vector<8x128xf32>
    %228 = arith.mulf %227, %226 : vector<8x128xf32>
    %229 = arith.addf %217, %228 : vector<8x128xf32>
    %c19 = arith.constant 19 : index
    %230 = memref.load %arg3[%c19] : memref<32xf32, #tpu.memory_space<smem>>
    %c19_59 = arith.constant 19 : index
    %231 = memref.load %arg1[%c19_59] : memref<32xf32, #tpu.memory_space<smem>>
    %232 = vector.broadcast %231 : f32 to vector<8x128xf32>
    %233 = arith.mulf %232, %0 : vector<8x128xf32>
    %c19_60 = arith.constant 19 : index
    %234 = memref.load %arg2[%c19_60] : memref<32xf32, #tpu.memory_space<smem>>
    %235 = vector.broadcast %234 : f32 to vector<8x128xf32>
    %236 = arith.addf %233, %235 : vector<8x128xf32>
    %cst_61 = arith.constant 0.000000e+00 : f32
    %237 = vector.broadcast %cst_61 : f32 to vector<8x128xf32>
    %238 = arith.maximumf %236, %237 : vector<8x128xf32>
    %239 = vector.broadcast %230 : f32 to vector<8x128xf32>
    %240 = arith.mulf %239, %238 : vector<8x128xf32>
    %241 = arith.addf %229, %240 : vector<8x128xf32>
    %c20 = arith.constant 20 : index
    %242 = memref.load %arg3[%c20] : memref<32xf32, #tpu.memory_space<smem>>
    %c20_62 = arith.constant 20 : index
    %243 = memref.load %arg1[%c20_62] : memref<32xf32, #tpu.memory_space<smem>>
    %244 = vector.broadcast %243 : f32 to vector<8x128xf32>
    %245 = arith.mulf %244, %0 : vector<8x128xf32>
    %c20_63 = arith.constant 20 : index
    %246 = memref.load %arg2[%c20_63] : memref<32xf32, #tpu.memory_space<smem>>
    %247 = vector.broadcast %246 : f32 to vector<8x128xf32>
    %248 = arith.addf %245, %247 : vector<8x128xf32>
    %cst_64 = arith.constant 0.000000e+00 : f32
    %249 = vector.broadcast %cst_64 : f32 to vector<8x128xf32>
    %250 = arith.maximumf %248, %249 : vector<8x128xf32>
    %251 = vector.broadcast %242 : f32 to vector<8x128xf32>
    %252 = arith.mulf %251, %250 : vector<8x128xf32>
    %253 = arith.addf %241, %252 : vector<8x128xf32>
    %c21 = arith.constant 21 : index
    %254 = memref.load %arg3[%c21] : memref<32xf32, #tpu.memory_space<smem>>
    %c21_65 = arith.constant 21 : index
    %255 = memref.load %arg1[%c21_65] : memref<32xf32, #tpu.memory_space<smem>>
    %256 = vector.broadcast %255 : f32 to vector<8x128xf32>
    %257 = arith.mulf %256, %0 : vector<8x128xf32>
    %c21_66 = arith.constant 21 : index
    %258 = memref.load %arg2[%c21_66] : memref<32xf32, #tpu.memory_space<smem>>
    %259 = vector.broadcast %258 : f32 to vector<8x128xf32>
    %260 = arith.addf %257, %259 : vector<8x128xf32>
    %cst_67 = arith.constant 0.000000e+00 : f32
    %261 = vector.broadcast %cst_67 : f32 to vector<8x128xf32>
    %262 = arith.maximumf %260, %261 : vector<8x128xf32>
    %263 = vector.broadcast %254 : f32 to vector<8x128xf32>
    %264 = arith.mulf %263, %262 : vector<8x128xf32>
    %265 = arith.addf %253, %264 : vector<8x128xf32>
    %c22 = arith.constant 22 : index
    %266 = memref.load %arg3[%c22] : memref<32xf32, #tpu.memory_space<smem>>
    %c22_68 = arith.constant 22 : index
    %267 = memref.load %arg1[%c22_68] : memref<32xf32, #tpu.memory_space<smem>>
    %268 = vector.broadcast %267 : f32 to vector<8x128xf32>
    %269 = arith.mulf %268, %0 : vector<8x128xf32>
    %c22_69 = arith.constant 22 : index
    %270 = memref.load %arg2[%c22_69] : memref<32xf32, #tpu.memory_space<smem>>
    %271 = vector.broadcast %270 : f32 to vector<8x128xf32>
    %272 = arith.addf %269, %271 : vector<8x128xf32>
    %cst_70 = arith.constant 0.000000e+00 : f32
    %273 = vector.broadcast %cst_70 : f32 to vector<8x128xf32>
    %274 = arith.maximumf %272, %273 : vector<8x128xf32>
    %275 = vector.broadcast %266 : f32 to vector<8x128xf32>
    %276 = arith.mulf %275, %274 : vector<8x128xf32>
    %277 = arith.addf %265, %276 : vector<8x128xf32>
    %c23 = arith.constant 23 : index
    %278 = memref.load %arg3[%c23] : memref<32xf32, #tpu.memory_space<smem>>
    %c23_71 = arith.constant 23 : index
    %279 = memref.load %arg1[%c23_71] : memref<32xf32, #tpu.memory_space<smem>>
    %280 = vector.broadcast %279 : f32 to vector<8x128xf32>
    %281 = arith.mulf %280, %0 : vector<8x128xf32>
    %c23_72 = arith.constant 23 : index
    %282 = memref.load %arg2[%c23_72] : memref<32xf32, #tpu.memory_space<smem>>
    %283 = vector.broadcast %282 : f32 to vector<8x128xf32>
    %284 = arith.addf %281, %283 : vector<8x128xf32>
    %cst_73 = arith.constant 0.000000e+00 : f32
    %285 = vector.broadcast %cst_73 : f32 to vector<8x128xf32>
    %286 = arith.maximumf %284, %285 : vector<8x128xf32>
    %287 = vector.broadcast %278 : f32 to vector<8x128xf32>
    %288 = arith.mulf %287, %286 : vector<8x128xf32>
    %289 = arith.addf %277, %288 : vector<8x128xf32>
    %c24 = arith.constant 24 : index
    %290 = memref.load %arg3[%c24] : memref<32xf32, #tpu.memory_space<smem>>
    %c24_74 = arith.constant 24 : index
    %291 = memref.load %arg1[%c24_74] : memref<32xf32, #tpu.memory_space<smem>>
    %292 = vector.broadcast %291 : f32 to vector<8x128xf32>
    %293 = arith.mulf %292, %0 : vector<8x128xf32>
    %c24_75 = arith.constant 24 : index
    %294 = memref.load %arg2[%c24_75] : memref<32xf32, #tpu.memory_space<smem>>
    %295 = vector.broadcast %294 : f32 to vector<8x128xf32>
    %296 = arith.addf %293, %295 : vector<8x128xf32>
    %cst_76 = arith.constant 0.000000e+00 : f32
    %297 = vector.broadcast %cst_76 : f32 to vector<8x128xf32>
    %298 = arith.maximumf %296, %297 : vector<8x128xf32>
    %299 = vector.broadcast %290 : f32 to vector<8x128xf32>
    %300 = arith.mulf %299, %298 : vector<8x128xf32>
    %301 = arith.addf %289, %300 : vector<8x128xf32>
    %c25 = arith.constant 25 : index
    %302 = memref.load %arg3[%c25] : memref<32xf32, #tpu.memory_space<smem>>
    %c25_77 = arith.constant 25 : index
    %303 = memref.load %arg1[%c25_77] : memref<32xf32, #tpu.memory_space<smem>>
    %304 = vector.broadcast %303 : f32 to vector<8x128xf32>
    %305 = arith.mulf %304, %0 : vector<8x128xf32>
    %c25_78 = arith.constant 25 : index
    %306 = memref.load %arg2[%c25_78] : memref<32xf32, #tpu.memory_space<smem>>
    %307 = vector.broadcast %306 : f32 to vector<8x128xf32>
    %308 = arith.addf %305, %307 : vector<8x128xf32>
    %cst_79 = arith.constant 0.000000e+00 : f32
    %309 = vector.broadcast %cst_79 : f32 to vector<8x128xf32>
    %310 = arith.maximumf %308, %309 : vector<8x128xf32>
    %311 = vector.broadcast %302 : f32 to vector<8x128xf32>
    %312 = arith.mulf %311, %310 : vector<8x128xf32>
    %313 = arith.addf %301, %312 : vector<8x128xf32>
    %c26 = arith.constant 26 : index
    %314 = memref.load %arg3[%c26] : memref<32xf32, #tpu.memory_space<smem>>
    %c26_80 = arith.constant 26 : index
    %315 = memref.load %arg1[%c26_80] : memref<32xf32, #tpu.memory_space<smem>>
    %316 = vector.broadcast %315 : f32 to vector<8x128xf32>
    %317 = arith.mulf %316, %0 : vector<8x128xf32>
    %c26_81 = arith.constant 26 : index
    %318 = memref.load %arg2[%c26_81] : memref<32xf32, #tpu.memory_space<smem>>
    %319 = vector.broadcast %318 : f32 to vector<8x128xf32>
    %320 = arith.addf %317, %319 : vector<8x128xf32>
    %cst_82 = arith.constant 0.000000e+00 : f32
    %321 = vector.broadcast %cst_82 : f32 to vector<8x128xf32>
    %322 = arith.maximumf %320, %321 : vector<8x128xf32>
    %323 = vector.broadcast %314 : f32 to vector<8x128xf32>
    %324 = arith.mulf %323, %322 : vector<8x128xf32>
    %325 = arith.addf %313, %324 : vector<8x128xf32>
    %c27 = arith.constant 27 : index
    %326 = memref.load %arg3[%c27] : memref<32xf32, #tpu.memory_space<smem>>
    %c27_83 = arith.constant 27 : index
    %327 = memref.load %arg1[%c27_83] : memref<32xf32, #tpu.memory_space<smem>>
    %328 = vector.broadcast %327 : f32 to vector<8x128xf32>
    %329 = arith.mulf %328, %0 : vector<8x128xf32>
    %c27_84 = arith.constant 27 : index
    %330 = memref.load %arg2[%c27_84] : memref<32xf32, #tpu.memory_space<smem>>
    %331 = vector.broadcast %330 : f32 to vector<8x128xf32>
    %332 = arith.addf %329, %331 : vector<8x128xf32>
    %cst_85 = arith.constant 0.000000e+00 : f32
    %333 = vector.broadcast %cst_85 : f32 to vector<8x128xf32>
    %334 = arith.maximumf %332, %333 : vector<8x128xf32>
    %335 = vector.broadcast %326 : f32 to vector<8x128xf32>
    %336 = arith.mulf %335, %334 : vector<8x128xf32>
    %337 = arith.addf %325, %336 : vector<8x128xf32>
    %c28 = arith.constant 28 : index
    %338 = memref.load %arg3[%c28] : memref<32xf32, #tpu.memory_space<smem>>
    %c28_86 = arith.constant 28 : index
    %339 = memref.load %arg1[%c28_86] : memref<32xf32, #tpu.memory_space<smem>>
    %340 = vector.broadcast %339 : f32 to vector<8x128xf32>
    %341 = arith.mulf %340, %0 : vector<8x128xf32>
    %c28_87 = arith.constant 28 : index
    %342 = memref.load %arg2[%c28_87] : memref<32xf32, #tpu.memory_space<smem>>
    %343 = vector.broadcast %342 : f32 to vector<8x128xf32>
    %344 = arith.addf %341, %343 : vector<8x128xf32>
    %cst_88 = arith.constant 0.000000e+00 : f32
    %345 = vector.broadcast %cst_88 : f32 to vector<8x128xf32>
    %346 = arith.maximumf %344, %345 : vector<8x128xf32>
    %347 = vector.broadcast %338 : f32 to vector<8x128xf32>
    %348 = arith.mulf %347, %346 : vector<8x128xf32>
    %349 = arith.addf %337, %348 : vector<8x128xf32>
    %c29 = arith.constant 29 : index
    %350 = memref.load %arg3[%c29] : memref<32xf32, #tpu.memory_space<smem>>
    %c29_89 = arith.constant 29 : index
    %351 = memref.load %arg1[%c29_89] : memref<32xf32, #tpu.memory_space<smem>>
    %352 = vector.broadcast %351 : f32 to vector<8x128xf32>
    %353 = arith.mulf %352, %0 : vector<8x128xf32>
    %c29_90 = arith.constant 29 : index
    %354 = memref.load %arg2[%c29_90] : memref<32xf32, #tpu.memory_space<smem>>
    %355 = vector.broadcast %354 : f32 to vector<8x128xf32>
    %356 = arith.addf %353, %355 : vector<8x128xf32>
    %cst_91 = arith.constant 0.000000e+00 : f32
    %357 = vector.broadcast %cst_91 : f32 to vector<8x128xf32>
    %358 = arith.maximumf %356, %357 : vector<8x128xf32>
    %359 = vector.broadcast %350 : f32 to vector<8x128xf32>
    %360 = arith.mulf %359, %358 : vector<8x128xf32>
    %361 = arith.addf %349, %360 : vector<8x128xf32>
    %c30 = arith.constant 30 : index
    %362 = memref.load %arg3[%c30] : memref<32xf32, #tpu.memory_space<smem>>
    %c30_92 = arith.constant 30 : index
    %363 = memref.load %arg1[%c30_92] : memref<32xf32, #tpu.memory_space<smem>>
    %364 = vector.broadcast %363 : f32 to vector<8x128xf32>
    %365 = arith.mulf %364, %0 : vector<8x128xf32>
    %c30_93 = arith.constant 30 : index
    %366 = memref.load %arg2[%c30_93] : memref<32xf32, #tpu.memory_space<smem>>
    %367 = vector.broadcast %366 : f32 to vector<8x128xf32>
    %368 = arith.addf %365, %367 : vector<8x128xf32>
    %cst_94 = arith.constant 0.000000e+00 : f32
    %369 = vector.broadcast %cst_94 : f32 to vector<8x128xf32>
    %370 = arith.maximumf %368, %369 : vector<8x128xf32>
    %371 = vector.broadcast %362 : f32 to vector<8x128xf32>
    %372 = arith.mulf %371, %370 : vector<8x128xf32>
    %373 = arith.addf %361, %372 : vector<8x128xf32>
    %c31 = arith.constant 31 : index
    %374 = memref.load %arg3[%c31] : memref<32xf32, #tpu.memory_space<smem>>
    %c31_95 = arith.constant 31 : index
    %375 = memref.load %arg1[%c31_95] : memref<32xf32, #tpu.memory_space<smem>>
    %376 = vector.broadcast %375 : f32 to vector<8x128xf32>
    %377 = arith.mulf %376, %0 : vector<8x128xf32>
    %c31_96 = arith.constant 31 : index
    %378 = memref.load %arg2[%c31_96] : memref<32xf32, #tpu.memory_space<smem>>
    %379 = vector.broadcast %378 : f32 to vector<8x128xf32>
    %380 = arith.addf %377, %379 : vector<8x128xf32>
    %cst_97 = arith.constant 0.000000e+00 : f32
    %381 = vector.broadcast %cst_97 : f32 to vector<8x128xf32>
    %382 = arith.maximumf %380, %381 : vector<8x128xf32>
    %383 = vector.broadcast %374 : f32 to vector<8x128xf32>
    %384 = arith.mulf %383, %382 : vector<8x128xf32>
    %385 = arith.addf %373, %384 : vector<8x128xf32>
    %c0_98 = arith.constant 0 : index
    %386 = memref.load %arg4[%c0_98] : memref<1xf32, #tpu.memory_space<smem>>
    %387 = vector.broadcast %386 : f32 to vector<8x128xf32>
    %388 = arith.addf %385, %387 : vector<8x128xf32>
    %c0_99 = arith.constant 0 : index
    %c0_100 = arith.constant 0 : index
    %389 = vector.load %arg6[%c0_99, %c0_100] : memref<8x128xf32, #tpu.memory_space<vmem>>, vector<8x128xf32>
    tpu.vector_store %arg6[%c0_99, %c0_100], %388 {strides = array<i32>} : memref<8x128xf32, #tpu.memory_space<vmem>>, vector<8x128xf32>,
    return
  }
  func.func @transform_0(%arg0: i32) -> i32 {
    %c0_i32 = arith.constant 0 : i32
    %c0_i32_0 = arith.constant 0 : i32
    return %c0_i32 : i32
  }
  func.func @transform_1(%arg0: i32) -> i32 {
    %c0_i32 = arith.constant 0 : i32
    %c0_i32_0 = arith.constant 0 : i32
    return %c0_i32 : i32
  }
  func.func @transform_2(%arg0: i32) -> i32 {
    %c0_i32 = arith.constant 0 : i32
    %c0_i32_0 = arith.constant 0 : i32
    return %c0_i32 : i32
  }
  func.func @transform_3(%arg0: i32) -> i32 {
    %c0_i32 = arith.constant 0 : i32
    %c0_i32_0 = arith.constant 0 : i32
    return %c0_i32 : i32
  }
  func.func @transform_4(%arg0: i32) -> (i32, i32) {
    %c0_i32 = arith.constant 0 : i32
    %c0_i32_0 = arith.constant 0 : i32
    return %arg0, %c0_i32 : i32, i32
  }
  func.func @transform_5(%arg0: i32) -> (i32, i32) {
    %c0_i32 = arith.constant 0 : i32
    %c0_i32_0 = arith.constant 0 : i32
    return %arg0, %c0_i32 : i32, i32
  }
}

</mosaic_0001>

<llo_original>
// kernel: tpu_custom_call.1
$region0: #{tpu_custom_call.1}
  #allocation0 [shape = 'u32[]', space=smem, size = 0x4, offset = 0x4, fixed_abs, tag = 'smem constant byte address 0x4 - core index']
  #allocation1 [shape = 'u32[72,128]{1,0:T(1,128)}', space=vmem, size = 0x9000, scoped, tag = 'internal scratch']
  #allocation2 [shape = 'f32[1]{0:T(128)S(6)}', space=smem, size = 0x200, scoped, tag = 'scoped memory for tpu_custom_call.1']
  %s0 = inlined_call_operand.vmem [shape: f32[32], index: 0, kind: input, shape index: {}]
  %s1 = inlined_call_operand.vmem [shape: f32[32], index: 1, kind: input, shape index: {}]
  %s2 = inlined_call_operand.vmem [shape: f32[32], index: 2, kind: input, shape index: {}]
  %s3 = inlined_call_operand.<no memory space> [shape: f32[1], index: 3, kind: input, shape index: {}]
  %s4 = inlined_call_operand.hbm [shape: f32[8,128], index: 4, kind: input, shape index: {}]
  %s5 = inlined_call_operand.hbm [shape: f32[8,128], index: 5, kind: output, shape index: {}]
  %s6 = sld [smem:[#allocation0]]
  $region46: #{tpu_custom_call.1} parent=0
    _
  %s8 = ssub.s32 1, %s6
  %s9 = scalar_select 0, %s8, %s6
  %10 = sst [smem:[#allocation2]] %s3
  $region1: #{tpu_custom_call.1} parent=0
    #allocation3 [shape = 'u8[512]{0}', space=smem, size = 0x200, scoped, tag = 'input window, operand 0, single buffered']
    #allocation4 [shape = 's32[1]{0}', space=sflag, size = 0x4, scoped, tag = 'scoped memory for tpu_custom_call.1']
    #allocation5 [shape = 's32[1]{0}', space=sflag, size = 0x4, scoped, tag = 'scoped memory for tpu_custom_call.1']
    #allocation6 [shape = 's32[1]{0}', space=sflag, size = 0x4, scoped, tag = 'scoped memory for tpu_custom_call.1']
    #allocation7 [shape = 'u8[512]{0}', space=smem, size = 0x200, scoped, tag = 'input window, operand 1, single buffered']
    #allocation8 [shape = 's32[1]{0}', space=sflag, size = 0x4, scoped, tag = 'scoped memory for tpu_custom_call.1']
    #allocation9 [shape = 'u8[512]{0}', space=smem, size = 0x200, scoped, tag = 'input window, operand 2, single buffered']
    #allocation10 [shape = 'u8[4096]{0}', space=vmem, size = 0x1000, scoped, tag = 'input window, operand 4, single buffered']
    #allocation11 [shape = 'u8[4096]{0}', space=vmem, size = 0x1000, scoped, tag = 'output window, operand 0, single buffered']
    %11 = vsyncpa [#allocation6], 0
    %12 = vsyncpa [#allocation8], 0
    %13 = vsyncpa [#allocation4], 0
    %14 = vsyncpa [#allocation5], 0
    // Predicated region
    $region2: #{tpu_custom_call.1} parent=1 // pred_check
      _
    $region3: #{tpu_custom_call.1} parent=1 // pred_check_branch
      %16 = sbr.rel (0) target = $region5
    $region4: #{tpu_custom_call.1} parent=1 // pred_region
      %18 = vsyncadd [#allocation6], 0
      %s20 = sshll.u32 %s0, 4
      %s21 = int_to_ptr.vmem [resolvable:$true] %s20
      %23 = dma.vmem_to_smem %s21, 16, [#allocation3], [#allocation6]
    $region5: #{tpu_custom_call.1} parent=1 // pred_fallthru
      _
    // Predicated region
    $region6: #{tpu_custom_call.1} parent=1 // pred_check
      _
    $region7: #{tpu_custom_call.1} parent=1 // pred_check_branch
      %25 = sbr.rel (0) target = $region9
    $region8: #{tpu_custom_call.1} parent=1 // pred_region
      %27 = vsyncadd [#allocation8], 0
      %s29 = sshll.u32 %s1, 4
      %s30 = int_to_ptr.vmem [resolvable:$true] %s29
      %32 = dma.vmem_to_smem %s30, 16, [#allocation7], [#allocation8]
    $region9: #{tpu_custom_call.1} parent=1 // pred_fallthru
      _
    // Predicated region
    $region10: #{tpu_custom_call.1} parent=1 // pred_check
      _
    $region11: #{tpu_custom_call.1} parent=1 // pred_check_branch
      %34 = sbr.rel (0) target = $region13
    $region12: #{tpu_custom_call.1} parent=1 // pred_region
      %36 = vsyncadd [#allocation8], 0
      %s38 = sshll.u32 %s2, 4
      %s39 = int_to_ptr.vmem [resolvable:$true] %s38
      %41 = dma.vmem_to_smem %s39, 16, [#allocation9], [#allocation8]
    $region13: #{tpu_custom_call.1} parent=1 // pred_fallthru
      _
    // Predicated region
    $region14: #{tpu_custom_call.1} parent=1 // pred_check
      _
    $region15: #{tpu_custom_call.1} parent=1 // pred_check_branch
      %43 = sbr.rel (0) target = $region17
    $region16: #{tpu_custom_call.1} parent=1 // pred_region
      _
    $region17: #{tpu_custom_call.1} parent=1 // pred_fallthru
      _
    // Predicated region
    $region18: #{tpu_custom_call.1} parent=1 // pred_check
      _
    $region19: #{tpu_custom_call.1} parent=1 // pred_check_branch
      %45 = sbr.rel (0) target = $region21
    $region20: #{tpu_custom_call.1} parent=1 // pred_region
      %47 = vsyncadd [#allocation4], 0
      %s49 = sshll.u32 %s4, 4
      %s50 = int_to_ptr.hbm [resolvable:$true] %s49
      %s51 = sshll.u32 [#allocation10], 4
      %s52 = int_to_ptr.vmem [resolvable:$true] %s51
      %54 = dma.hbm_to_vmem [thread:$0]  %s50, 128, %s52, [#allocation4]
    $region21: #{tpu_custom_call.1} parent=1 // pred_fallthru
      _
    // Predicated region
    $region22: #{tpu_custom_call.1} parent=1 // pred_check
      _
    $region23: #{tpu_custom_call.1} parent=1 // pred_check_branch
      %56 = sbr.rel (0) target = $region25
    $region24: #{tpu_custom_call.1} parent=1 // pred_region
      %58 = dma.done [#allocation6], 16
    $region25: #{tpu_custom_call.1} parent=1 // pred_fallthru
      _
    // Predicated region
    $region26: #{tpu_custom_call.1} parent=1 // pred_check
      _
    $region27: #{tpu_custom_call.1} parent=1 // pred_check_branch
      %60 = sbr.rel (0) target = $region29
    $region28: #{tpu_custom_call.1} parent=1 // pred_region
      %62 = dma.done [#allocation8], 16
    $region29: #{tpu_custom_call.1} parent=1 // pred_fallthru
      _
    // Predicated region
    $region30: #{tpu_custom_call.1} parent=1 // pred_check
      _
    $region31: #{tpu_custom_call.1} parent=1 // pred_check_branch
      %64 = sbr.rel (0) target = $region33
    $region32: #{tpu_custom_call.1} parent=1 // pred_region
      %66 = dma.done [#allocation8], 16
    $region33: #{tpu_custom_call.1} parent=1 // pred_fallthru
      _
    // Predicated region
    $region34: #{tpu_custom_call.1} parent=1 // pred_check
      _
    $region35: #{tpu_custom_call.1} parent=1 // pred_check_branch
      %68 = sbr.rel (0) target = $region37
    $region36: #{tpu_custom_call.1} parent=1 // pred_region
      %70 = dma.done [#allocation4], 128
    $region37: #{tpu_custom_call.1} parent=1 // pred_fallthru
      _
    %71 = sfence
    %v72 = vld [vmem:[#allocation10] sm:$0xff]
    %s73 = sld [smem:[#allocation9]]
    %s74 = sld [smem:[#allocation3]]
    %v75 = vstv %s74
    %v76 = vmul.f32 %v75, %v72
    %s77 = sld [smem:[#allocation7]]
    %v78 = vstv %s77
    %v79 = vadd.f32 %v76, %v78
    %v80 = vmax.f32 %v79, 0.0
    %v81 = vstv %s73
    %v82 = vmul.f32 %v81, %v80
    %v83 = vadd.f32 %v82, 0.0
    %s84 = sld [smem:[#allocation9 + $0x1]]
    %s85 = sld [smem:[#allocation3 + $0x1]]
    %v86 = vstv %s85
    %v87 = vmul.f32 %v86, %v72
    %s88 = sld [smem:[#allocation7 + $0x1]]
    %v89 = vstv %s88
    %v90 = vadd.f32 %v87, %v89
    %v91 = vmax.f32 %v90, 0.0
    %v92 = vstv %s84
    %v93 = vmul.f32 %v92, %v91
    %v94 = vadd.f32 %v83, %v93
    %s95 = sld [smem:[#allocation9 + $0x2]]
    %s96 = sld [smem:[#allocation3 + $0x2]]
    %v97 = vstv %s96
    %v98 = vmul.f32 %v97, %v72
    %s99 = sld [smem:[#allocation7 + $0x2]]
    %v100 = vstv %s99
    %v101 = vadd.f32 %v98, %v100
    %v102 = vmax.f32 %v101, 0.0
    %v103 = vstv %s95
    %v104 = vmul.f32 %v103, %v102
    %v105 = vadd.f32 %v94, %v104
    %s106 = sld [smem:[#allocation9 + $0x3]]
    %s107 = sld [smem:[#allocation3 + $0x3]]
    %v108 = vstv %s107
    %v109 = vmul.f32 %v108, %v72
    %s110 = sld [smem:[#allocation7 + $0x3]]
    %v111 = vstv %s110
    %v112 = vadd.f32 %v109, %v111
    %v113 = vmax.f32 %v112, 0.0
    %v114 = vstv %s106
    %v115 = vmul.f32 %v114, %v113
    %v116 = vadd.f32 %v105, %v115
    %s117 = sld [smem:[#allocation9 + $0x4]]
    %s118 = sld [smem:[#allocation3 + $0x4]]
    %v119 = vstv %s118
    %v120 = vmul.f32 %v119, %v72
    %s121 = sld [smem:[#allocation7 + $0x4]]
    %v122 = vstv %s121
    %v123 = vadd.f32 %v120, %v122
    %v124 = vmax.f32 %v123, 0.0
    %v125 = vstv %s117
    %v126 = vmul.f32 %v125, %v124
    %v127 = vadd.f32 %v116, %v126
    %s128 = sld [smem:[#allocation9 + $0x5]]
    %s129 = sld [smem:[#allocation3 + $0x5]]
    %v130 = vstv %s129
    %v131 = vmul.f32 %v130, %v72
    %s132 = sld [smem:[#allocation7 + $0x5]]
    %v133 = vstv %s132
    %v134 = vadd.f32 %v131, %v133
    %v135 = vmax.f32 %v134, 0.0
    %v136 = vstv %s128
    %v137 = vmul.f32 %v136, %v135
    %v138 = vadd.f32 %v127, %v137
    %s139 = sld [smem:[#allocation9 + $0x6]]
    %s140 = sld [smem:[#allocation3 + $0x6]]
    %v141 = vstv %s140
    %v142 = vmul.f32 %v141, %v72
    %s143 = sld [smem:[#allocation7 + $0x6]]
    %v144 = vstv %s143
    %v145 = vadd.f32 %v142, %v144
    %v146 = vmax.f32 %v145, 0.0
    %v147 = vstv %s139
    %v148 = vmul.f32 %v147, %v146
    %v149 = vadd.f32 %v138, %v148
    %s150 = sld [smem:[#allocation9 + $0x7]]
    %s151 = sld [smem:[#allocation3 + $0x7]]
    %v152 = vstv %s151
    %v153 = vmul.f32 %v152, %v72
    %s154 = sld [smem:[#allocation7 + $0x7]]
    %v155 = vstv %s154
    %v156 = vadd.f32 %v153, %v155
    %v157 = vmax.f32 %v156, 0.0
    %v158 = vstv %s150
    %v159 = vmul.f32 %v158, %v157
    %v160 = vadd.f32 %v149, %v159
    %s161 = sld [smem:[#allocation9 + $0x8]]
    %s162 = sld [smem:[#allocation3 + $0x8]]
    %v163 = vstv %s162
    %v164 = vmul.f32 %v163, %v72
    %s165 = sld [smem:[#allocation7 + $0x8]]
    %v166 = vstv %s165
    %v167 = vadd.f32 %v164, %v166
    %v168 = vmax.f32 %v167, 0.0
    %v169 = vstv %s161
    %v170 = vmul.f32 %v169, %v168
    %v171 = vadd.f32 %v160, %v170
    %s172 = sld [smem:[#allocation9 + $0x9]]
    %s173 = sld [smem:[#allocation3 + $0x9]]
    %v174 = vstv %s173
    %v175 = vmul.f32 %v174, %v72
    %s176 = sld [smem:[#allocation7 + $0x9]]
    %v177 = vstv %s176
    %v178 = vadd.f32 %v175, %v177
    %v179 = vmax.f32 %v178, 0.0
    %v180 = vstv %s172
    %v181 = vmul.f32 %v180, %v179
    %v182 = vadd.f32 %v171, %v181
    %s183 = sld [smem:[#allocation9 + $0xa]]
    %s184 = sld [smem:[#allocation3 + $0xa]]
    %v185 = vstv %s184
    %v186 = vmul.f32 %v185, %v72
    %s187 = sld [smem:[#allocation7 + $0xa]]
    %v188 = vstv %s187
    %v189 = vadd.f32 %v186, %v188
    %v190 = vmax.f32 %v189, 0.0
    %v191 = vstv %s183
    %v192 = vmul.f32 %v191, %v190
    %v193 = vadd.f32 %v182, %v192
    %s194 = sld [smem:[#allocation9 + $0xb]]
    %s195 = sld [smem:[#allocation3 + $0xb]]
    %v196 = vstv %s195
    %v197 = vmul.f32 %v196, %v72
    %s198 = sld [smem:[#allocation7 + $0xb]]
    %v199 = vstv %s198
    %v200 = vadd.f32 %v197, %v199
    %v201 = vmax.f32 %v200, 0.0
    %v202 = vstv %s194
    %v203 = vmul.f32 %v202, %v201
    %v204 = vadd.f32 %v193, %v203
    %s205 = sld [smem:[#allocation9 + $0xc]]
    %s206 = sld [smem:[#allocation3 + $0xc]]
    %v207 = vstv %s206
    %v208 = vmul.f32 %v207, %v72
    %s209 = sld [smem:[#allocation7 + $0xc]]
    %v210 = vstv %s209
    %v211 = vadd.f32 %v208, %v210
    %v212 = vmax.f32 %v211, 0.0
    %v213 = vstv %s205
    %v214 = vmul.f32 %v213, %v212
    %v215 = vadd.f32 %v204, %v214
    %s216 = sld [smem:[#allocation9 + $0xd]]
    %s217 = sld [smem:[#allocation3 + $0xd]]
    %v218 = vstv %s217
    %v219 = vmul.f32 %v218, %v72
    %s220 = sld [smem:[#allocation7 + $0xd]]
    %v221 = vstv %s220
    %v222 = vadd.f32 %v219, %v221
    %v223 = vmax.f32 %v222, 0.0
    %v224 = vstv %s216
    %v225 = vmul.f32 %v224, %v223
    %v226 = vadd.f32 %v215, %v225
    %s227 = sld [smem:[#allocation9 + $0xe]]
    %s228 = sld [smem:[#allocation3 + $0xe]]
    %v229 = vstv %s228
    %v230 = vmul.f32 %v229, %v72
    %s231 = sld [smem:[#allocation7 + $0xe]]
    %v232 = vstv %s231
    %v233 = vadd.f32 %v230, %v232
    %v234 = vmax.f32 %v233, 0.0
    %v235 = vstv %s227
    %v236 = vmul.f32 %v235, %v234
    %v237 = vadd.f32 %v226, %v236
    %s238 = sld [smem:[#allocation9 + $0xf]]
    %s239 = sld [smem:[#allocation3 + $0xf]]
    %v240 = vstv %s239
    %v241 = vmul.f32 %v240, %v72
    %s242 = sld [smem:[#allocation7 + $0xf]]
    %v243 = vstv %s242
    %v244 = vadd.f32 %v241, %v243
    %v245 = vmax.f32 %v244, 0.0
    %v246 = vstv %s238
    %v247 = vmul.f32 %v246, %v245
    %v248 = vadd.f32 %v237, %v247
    %s249 = sld [smem:[#allocation9 + $0x10]]
    %s250 = sld [smem:[#allocation3 + $0x10]]
    %v251 = vstv %s250
    %v252 = vmul.f32 %v251, %v72
    %s253 = sld [smem:[#allocation7 + $0x10]]
    %v254 = vstv %s253
    %v255 = vadd.f32 %v252, %v254
    %v256 = vmax.f32 %v255, 0.0
    %v257 = vstv %s249
    %v258 = vmul.f32 %v257, %v256
    %v259 = vadd.f32 %v248, %v258
    %s260 = sld [smem:[#allocation9 + $0x11]]
    %s261 = sld [smem:[#allocation3 + $0x11]]
    %v262 = vstv %s261
    %v263 = vmul.f32 %v262, %v72
    %s264 = sld [smem:[#allocation7 + $0x11]]
    %v265 = vstv %s264
    %v266 = vadd.f32 %v263, %v265
    %v267 = vmax.f32 %v266, 0.0
    %v268 = vstv %s260
    %v269 = vmul.f32 %v268, %v267
    %v270 = vadd.f32 %v259, %v269
    %s271 = sld [smem:[#allocation9 + $0x12]]
    %s272 = sld [smem:[#allocation3 + $0x12]]
    %v273 = vstv %s272
    %v274 = vmul.f32 %v273, %v72
    %s275 = sld [smem:[#allocation7 + $0x12]]
    %v276 = vstv %s275
    %v277 = vadd.f32 %v274, %v276
    %v278 = vmax.f32 %v277, 0.0
    %v279 = vstv %s271
    %v280 = vmul.f32 %v279, %v278
    %v281 = vadd.f32 %v270, %v280
    %s282 = sld [smem:[#allocation9 + $0x13]]
    %s283 = sld [smem:[#allocation3 + $0x13]]
    %v284 = vstv %s283
    %v285 = vmul.f32 %v284, %v72
    %s286 = sld [smem:[#allocation7 + $0x13]]
    %v287 = vstv %s286
    %v288 = vadd.f32 %v285, %v287
    %v289 = vmax.f32 %v288, 0.0
    %v290 = vstv %s282
    %v291 = vmul.f32 %v290, %v289
    %v292 = vadd.f32 %v281, %v291
    %s293 = sld [smem:[#allocation9 + $0x14]]
    %s294 = sld [smem:[#allocation3 + $0x14]]
    %v295 = vstv %s294
    %v296 = vmul.f32 %v295, %v72
    %s297 = sld [smem:[#allocation7 + $0x14]]
    %v298 = vstv %s297
    %v299 = vadd.f32 %v296, %v298
    %v300 = vmax.f32 %v299, 0.0
    %v301 = vstv %s293
    %v302 = vmul.f32 %v301, %v300
    %v303 = vadd.f32 %v292, %v302
    %s304 = sld [smem:[#allocation9 + $0x15]]
    %s305 = sld [smem:[#allocation3 + $0x15]]
    %v306 = vstv %s305
    %v307 = vmul.f32 %v306, %v72
    %s308 = sld [smem:[#allocation7 + $0x15]]
    %v309 = vstv %s308
    %v310 = vadd.f32 %v307, %v309
    %v311 = vmax.f32 %v310, 0.0
    %v312 = vstv %s304
    %v313 = vmul.f32 %v312, %v311
    %v314 = vadd.f32 %v303, %v313
    %s315 = sld [smem:[#allocation9 + $0x16]]
    %s316 = sld [smem:[#allocation3 + $0x16]]
    %v317 = vstv %s316
    %v318 = vmul.f32 %v317, %v72
    %s319 = sld [smem:[#allocation7 + $0x16]]
    %v320 = vstv %s319
    %v321 = vadd.f32 %v318, %v320
    %v322 = vmax.f32 %v321, 0.0
    %v323 = vstv %s315
    %v324 = vmul.f32 %v323, %v322
    %v325 = vadd.f32 %v314, %v324
    %s326 = sld [smem:[#allocation9 + $0x17]]
    %s327 = sld [smem:[#allocation3 + $0x17]]
    %v328 = vstv %s327
    %v329 = vmul.f32 %v328, %v72
    %s330 = sld [smem:[#allocation7 + $0x17]]
    %v331 = vstv %s330
    %v332 = vadd.f32 %v329, %v331
    %v333 = vmax.f32 %v332, 0.0
    %v334 = vstv %s326
    %v335 = vmul.f32 %v334, %v333
    %v336 = vadd.f32 %v325, %v335
    %s337 = sld [smem:[#allocation9 + $0x18]]
    %s338 = sld [smem:[#allocation3 + $0x18]]
    %v339 = vstv %s338
    %v340 = vmul.f32 %v339, %v72
    %s341 = sld [smem:[#allocation7 + $0x18]]
    %v342 = vstv %s341
    %v343 = vadd.f32 %v340, %v342
    %v344 = vmax.f32 %v343, 0.0
    %v345 = vstv %s337
    %v346 = vmul.f32 %v345, %v344
    %v347 = vadd.f32 %v336, %v346
    %s348 = sld [smem:[#allocation9 + $0x19]]
    %s349 = sld [smem:[#allocation3 + $0x19]]
    %v350 = vstv %s349
    %v351 = vmul.f32 %v350, %v72
    %s352 = sld [smem:[#allocation7 + $0x19]]
    %v353 = vstv %s352
    %v354 = vadd.f32 %v351, %v353
    %v355 = vmax.f32 %v354, 0.0
    %v356 = vstv %s348
    %v357 = vmul.f32 %v356, %v355
    %v358 = vadd.f32 %v347, %v357
    %s359 = sld [smem:[#allocation9 + $0x1a]]
    %s360 = sld [smem:[#allocation3 + $0x1a]]
    %v361 = vstv %s360
    %v362 = vmul.f32 %v361, %v72
    %s363 = sld [smem:[#allocation7 + $0x1a]]
    %v364 = vstv %s363
    %v365 = vadd.f32 %v362, %v364
    %v366 = vmax.f32 %v365, 0.0
    %v367 = vstv %s359
    %v368 = vmul.f32 %v367, %v366
    %v369 = vadd.f32 %v358, %v368
    %s370 = sld [smem:[#allocation9 + $0x1b]]
    %s371 = sld [smem:[#allocation3 + $0x1b]]
    %v372 = vstv %s371
    %v373 = vmul.f32 %v372, %v72
    %s374 = sld [smem:[#allocation7 + $0x1b]]
    %v375 = vstv %s374
    %v376 = vadd.f32 %v373, %v375
    %v377 = vmax.f32 %v376, 0.0
    %v378 = vstv %s370
    %v379 = vmul.f32 %v378, %v377
    %v380 = vadd.f32 %v369, %v379
    %s381 = sld [smem:[#allocation9 + $0x1c]]
    %s382 = sld [smem:[#allocation3 + $0x1c]]
    %v383 = vstv %s382
    %v384 = vmul.f32 %v383, %v72
    %s385 = sld [smem:[#allocation7 + $0x1c]]
    %v386 = vstv %s385
    %v387 = vadd.f32 %v384, %v386
    %v388 = vmax.f32 %v387, 0.0
    %v389 = vstv %s381
    %v390 = vmul.f32 %v389, %v388
    %v391 = vadd.f32 %v380, %v390
    %s392 = sld [smem:[#allocation9 + $0x1d]]
    %s393 = sld [smem:[#allocation3 + $0x1d]]
    %v394 = vstv %s393
    %v395 = vmul.f32 %v394, %v72
    %s396 = sld [smem:[#allocation7 + $0x1d]]
    %v397 = vstv %s396
    %v398 = vadd.f32 %v395, %v397
    %v399 = vmax.f32 %v398, 0.0
    %v400 = vstv %s392
    %v401 = vmul.f32 %v400, %v399
    %v402 = vadd.f32 %v391, %v401
    %s403 = sld [smem:[#allocation9 + $0x1e]]
    %s404 = sld [smem:[#allocation3 + $0x1e]]
    %v405 = vstv %s404
    %v406 = vmul.f32 %v405, %v72
    %s407 = sld [smem:[#allocation7 + $0x1e]]
    %v408 = vstv %s407
    %v409 = vadd.f32 %v406, %v408
    %v410 = vmax.f32 %v409, 0.0
    %v411 = vstv %s403
    %v412 = vmul.f32 %v411, %v410
    %v413 = vadd.f32 %v402, %v412
    %s414 = sld [smem:[#allocation9 + $0x1f]]
    %s415 = sld [smem:[#allocation3 + $0x1f]]
    %v416 = vstv %s415
    %v417 = vmul.f32 %v416, %v72
    %s418 = sld [smem:[#allocation7 + $0x1f]]
    %v419 = vstv %s418
    %v420 = vadd.f32 %v417, %v419
    %v421 = vmax.f32 %v420, 0.0
    %v422 = vstv %s414
    %v423 = vmul.f32 %v422, %v421
    %v424 = vadd.f32 %v413, %v423
    %s425 = sld [smem:[#allocation2]]
    %v426 = vstv %s425
    %v427 = vadd.f32 %v424, %v426
    %428 = vst [vmem:[#allocation11] sm:$0xff] %v427
    // Predicated region
    $region38: #{tpu_custom_call.1} parent=1 // pred_check
      _
    $region39: #{tpu_custom_call.1} parent=1 // pred_check_branch
      %430 = sbr.rel (0) target = $region41
    $region40: #{tpu_custom_call.1} parent=1 // pred_region
      %432 = vsyncadd [#allocation5], 0
      %s434 = sshll.u32 [#allocation11], 4
      %s435 = int_to_ptr.vmem [resolvable:$true] %s434
      %s436 = sshll.u32 %s5, 4
      %s437 = int_to_ptr.hbm [resolvable:$true] %s436
      %439 = dma.vmem_to_hbm [thread:$0]  %s435, 128, %s437, [#allocation5]
    $region41: #{tpu_custom_call.1} parent=1 // pred_fallthru
      _
    // Predicated region
    $region42: #{tpu_custom_call.1} parent=1 // pred_check
      _
    $region43: #{tpu_custom_call.1} parent=1 // pred_check_branch
      %441 = sbr.rel (0) target = $region45
    $region44: #{tpu_custom_call.1} parent=1 // pred_region
      %443 = dma.done [#allocation5], 128
    $region45: #{tpu_custom_call.1} parent=1 // pred_fallthru
      _
    %444 = vsyncpa [#allocation4], 1
    %445 = vsyncpa [#allocation5], 1
    %446 = vsyncpa [#allocation6], 1
    %447 = vsyncpa [#allocation8], 1

</llo_original>
